<compile_context>
chip_gen: v5e
topology: v5e:2x2
jax: 0.10.0
libtpu: 0.0.40
codegen_flags: <defaults>
</compile_context>

<pallas_src>
import jax
import jax.numpy as jnp
import numpy as np
from jax.experimental import pallas as pl
from jax.experimental.pallas import tpu as pltpu

# ---------------- model hyper-params (mirrors BaseGraphNetwork.__init__) ----
INPUT_DIM = 8
HIDDEN_LAYERS = 2
HIDDEN_DIM = 16
OUTPUT_DIM = 1
POOLING = "mean"
DROPOUT_PROBA = 0.0     # identity in forward (eval semantics)
BATCH_NORM = False

N_NODES = 16            # nodes per graph mini-batch
N_GRAPHS = 2            # graphs per mini-batch
N_BATCHES = 8           # total mini-batches handled by ONE pallas_call
BB = 4                  # mini-batches per grid step (block over batch axis)

F_PAD = 128             # lane-padded feature / hidden / output width


# ---------------------------- Pallas kernel ---------------------------------
def gnn_batched_kernel(a_ref, x_ref, p_ref, w_ref, b_ref, out_ref):
    """One grid step = BB graph mini-batches: 2x GCNConv+ReLU, mean-pool, Linear.

    Ref shapes (per grid step):
      a_ref  : (BB, N, N)           normalized adjacencies
      x_ref  : (BB, N, F_PAD)       node features (zero-padded to 128 lanes)
      p_ref  : (BB, G, N)           mean-pool matrices
      w_ref  : (L+1, F_PAD, F_PAD)  packed, zero-padded weights (resident)
      b_ref  : (L+1, 1, F_PAD)      packed, zero-padded biases  (resident)
      out_ref: (BB, G, F_PAD)       lane-dense output slab (col 0 = real output)
    """
    bb, n, f = x_ref.shape
    a = a_ref[...]                                   # [BB, N, N]

    # merged-batch node-feature slab: all weight matmuls are one big 2-D MXU op
    h2 = x_ref[...].reshape(bb * n, f)               # [BB*N, F_PAD]

    # ---- graph conv layers: GCNConv + ReLU (dropout p=0 -> identity) ----
    for l in range(HIDDEN_LAYERS):
        hw = jnp.dot(h2, w_ref[l], preferred_element_type=jnp.float32)   # [BB*N, F]
        h3 = jnp.einsum("bmn,bnf->bmf", a, hw.reshape(bb, n, f),
                        preferred_element_type=jnp.float32)              # [BB, N, F]
        h2 = jnp.maximum(h3.reshape(bb * n, f) + b_ref[l], 0.0)          # bias + ReLU

    # ---- final Linear fused before pooling: (P @ h) @ Wfc == P @ (h @ Wfc) ----
    hw = jnp.dot(h2, w_ref[HIDDEN_LAYERS],
                 preferred_element_type=jnp.float32)                     # [BB*N, F]
    pooled = jnp.einsum("bgn,bnf->bgf", p_ref[...], hw.reshape(bb, n, f),
                        preferred_element_type=jnp.float32)              # [BB, G, F]
    out_ref[...] = pooled + b_ref[HIDDEN_LAYERS].reshape(1, 1, f)


def base_graph_network_forward(a_stack, x_pad, p_stack, w_packed, b_packed):
    """Batched fused forward: grid over blocks of mini-batches, params resident."""
    B, N, _ = a_stack.shape
    G = p_stack.shape[1]
    L1 = w_packed.shape[0]                       # HIDDEN_LAYERS + 1
    assert B % BB == 0

    out_pad = pl.pallas_call(
        gnn_batched_kernel,
        out_shape=jax.ShapeDtypeStruct((B, G, F_PAD), jnp.float32),
        grid_spec=pltpu.PrefetchScalarGridSpec(
            num_scalar_prefetch=0,
            grid=(B // BB,),
            in_specs=[
                pl.BlockSpec((BB, N, N), lambda b: (b, 0, 0)),          # A_hat block
                pl.BlockSpec((BB, N, F_PAD), lambda b: (b, 0, 0)),      # X block
                pl.BlockSpec((BB, G, N), lambda b: (b, 0, 0)),          # P block
                pl.BlockSpec((L1, F_PAD, F_PAD), lambda b: (0, 0, 0)),  # weights (resident)
                pl.BlockSpec((L1, 1, F_PAD), lambda b: (0, 0, 0)),      # biases  (resident)
            ],
            out_specs=pl.BlockSpec((BB, G, F_PAD), lambda b: (b, 0, 0)),
        ),
        compiler_params=pltpu.CompilerParams(
            dimension_semantics=("parallel",)),      # megacore sharding on v7x
    )(a_stack, x_pad, p_stack, w_packed, b_packed)

    # strip lane padding: only the first OUTPUT_DIM columns are meaningful
    return out_pad[..., :OUTPUT_DIM]                 # [B, G, OUTPUT_DIM]


# ------------------------------ glue (plain JAX) -----------------------------
def build_normalized_adjacency(edge_index, num_nodes):
    """GCNConv-style: A_hat = D^{-1/2} (A + I) D^{-1/2} (dense)."""
    src, dst = edge_index
    a = jnp.zeros((num_nodes, num_nodes), jnp.float32).at[dst, src].set(1.0)
    a = a + jnp.eye(num_nodes, dtype=jnp.float32)        # self loops
    deg = jnp.sum(a, axis=1)
    dinv = jnp.where(deg > 0, 1.0 / jnp.sqrt(deg), 0.0)
    return dinv[:, None] * a * dinv[None, :]


def build_pool_matrix(batch, num_graphs, pooling="mean"):
    """P[g, i] = 1/|g| (mean) or 1 (add) if node i belongs to graph g."""
    onehot = (batch[None, :] == jnp.arange(num_graphs)[:, None]).astype(jnp.float32)
    if pooling == "mean":
        counts = jnp.maximum(jnp.sum(onehot, axis=1, keepdims=True), 1.0)
        return onehot / counts
    elif pooling == "add":
        return onehot
    else:
        # TODO(synk): 'max' pooling is a segment-max, not a matmul; not fused here.
        raise ValueError("only 'mean'/'add' pooling supported in this kernel")


def init_params(key):
    """Deterministic synthetic parameters (shapes match the module's layers)."""
    k = jax.random.split(key, 6)
    s = 0.1
    w1 = s * jax.random.normal(k[0], (INPUT_DIM, HIDDEN_DIM), jnp.float32)
    b1 = s * jax.random.normal(k[1], (1, HIDDEN_DIM), jnp.float32)
    w2 = s * jax.random.normal(k[2], (HIDDEN_DIM, HIDDEN_DIM), jnp.float32)
    b2 = s * jax.random.normal(k[3], (1, HIDDEN_DIM), jnp.float32)
    wfc = s * jax.random.normal(k[4], (HIDDEN_DIM, OUTPUT_DIM), jnp.float32)
    bfc = s * jax.random.normal(k[5], (1, OUTPUT_DIM), jnp.float32)
    return (w1, b1, w2, b2, wfc, bfc)


def pack_params(params):
    """Zero-pad weights/biases to 128 lanes and stack into 2 arrays (2 DMAs, not 6)."""
    w1, b1, w2, b2, wfc, bfc = params
    L1 = HIDDEN_LAYERS + 1
    w_packed = jnp.zeros((L1, F_PAD, F_PAD), jnp.float32)
    w_packed = w_packed.at[0, :INPUT_DIM, :HIDDEN_DIM].set(w1)
    w_packed = w_packed.at[1, :HIDDEN_DIM, :HIDDEN_DIM].set(w2)
    w_packed = w_packed.at[2, :HIDDEN_DIM, :OUTPUT_DIM].set(wfc)
    b_packed = jnp.zeros((L1, 1, F_PAD), jnp.float32)
    b_packed = b_packed.at[0, 0, :HIDDEN_DIM].set(b1[0])
    b_packed = b_packed.at[1, 0, :HIDDEN_DIM].set(b2[0])
    b_packed = b_packed.at[2, 0, :OUTPUT_DIM].set(bfc[0])
    return w_packed, b_packed


def reference_forward(a_hat, x, params, pool_mat):
    w1, b1, w2, b2, wfc, bfc = params
    h = jnp.maximum(a_hat @ (x @ w1) + b1, 0.0)
    h = jnp.maximum(a_hat @ (h @ w2) + b2, 0.0)
    return (pool_mat @ h) @ wfc + bfc


# --------------------------------- main --------------------------------------
if __name__ == "__main__":
    key = jax.random.PRNGKey(0)
    kx, kp = jax.random.split(key)

    # two graphs of 8 nodes each per mini-batch: undirected chain within each graph
    src, dst = [], []
    for g in range(N_GRAPHS):
        base = g * (N_NODES // N_GRAPHS)
        for i in range(N_NODES // N_GRAPHS - 1):
            src += [base + i, base + i + 1]
            dst += [base + i + 1, base + i]
    edge_index = jnp.array([src, dst], dtype=jnp.int32)                  # [2, E]
    batch_vec = jnp.repeat(jnp.arange(N_GRAPHS, dtype=jnp.int32),
                           N_NODES // N_GRAPHS)                          # [N]

    a_hat = build_normalized_adjacency(edge_index, N_NODES)              # [N, N]
    pool_mat = build_pool_matrix(batch_vec, N_GRAPHS, POOLING)           # [G, N]
    params = init_params(kp)
    w_packed, b_packed = pack_params(params)

    # stack N_BATCHES mini-batches (same topology, different node features)
    a_stack = jnp.tile(a_hat[None], (N_BATCHES, 1, 1))                   # [B, N, N]
    p_stack = jnp.tile(pool_mat[None], (N_BATCHES, 1, 1))                # [B, G, N]
    x = jax.random.normal(kx, (N_BATCHES, N_NODES, INPUT_DIM), jnp.float32)
    x_pad = jnp.zeros((N_BATCHES, N_NODES, F_PAD), jnp.float32)
    x_pad = x_pad.at[..., :INPUT_DIM].set(x)                             # [B, N, 128]

    out = base_graph_network_forward(a_stack, x_pad, p_stack, w_packed, b_packed)
    out = jax.block_until_ready(out)                                     # [B, G, out]

    ref = np.stack([np.asarray(reference_forward(a_hat, x[b], params, pool_mat))
                    for b in range(N_BATCHES)])

    assert out.shape == (N_BATCHES, N_GRAPHS, OUTPUT_DIM), out.shape
    assert np.allclose(np.asarray(out), ref, atol=1e-4, rtol=1e-4)

    print("KERNEL_OK")
</pallas_src>

<mosaic_0001>
module attributes {stable_mosaic.version = 11 : i64} {
  func.func @gnn_batched_kernel(%arg0: i32, %arg1: memref<4x16x16xf32, #tpu.memory_space<vmem>>, %arg2: memref<4x16x128xf32, #tpu.memory_space<vmem>>, %arg3: memref<4x2x16xf32, #tpu.memory_space<vmem>>, %arg4: memref<3x128x128xf32, #tpu.memory_space<vmem>>, %arg5: memref<3x1x128xf32, #tpu.memory_space<vmem>>, %arg6: memref<4x2x128xf32, #tpu.memory_space<vmem>>) attributes {dimension_semantics = [#tpu.dimension_semantics<parallel>], iteration_bounds = array<i64: 2>, scalar_prefetch = 0 : i64, scratch_operands = 0 : i64, tpu.core_type = #tpu.core_type<tc>, window_params = [{transform_indices = @transform_0, window_bounds = array<i64: 4, 16, 16>}, {transform_indices = @transform_1, window_bounds = array<i64: 4, 16, 128>}, {transform_indices = @transform_2, window_bounds = array<i64: 4, 2, 16>}, {pipeline_mode = #tpu.pipeline_mode<synchronous>, transform_indices = @transform_3, window_bounds = array<i64: 3, 128, 128>}, {pipeline_mode = #tpu.pipeline_mode<synchronous>, transform_indices = @transform_4, window_bounds = array<i64: 3, 1, 128>}, {transform_indices = @transform_5, window_bounds = array<i64: 4, 2, 128>}]} {
    %c0 = arith.constant 0 : index
    %c0_0 = arith.constant 0 : index
    %c0_1 = arith.constant 0 : index
    %0 = vector.load %arg1[%c0, %c0_0, %c0_1] : memref<4x16x16xf32, #tpu.memory_space<vmem>>, vector<4x16x16xf32>
    %c0_2 = arith.constant 0 : index
    %c0_3 = arith.constant 0 : index
    %c0_4 = arith.constant 0 : index
    %1 = vector.load %arg2[%c0_2, %c0_3, %c0_4] : memref<4x16x128xf32, #tpu.memory_space<vmem>>, vector<4x16x128xf32>
    %2 = vector.shape_cast %1 : vector<4x16x128xf32> to vector<64x128xf32>
    %c0_5 = arith.constant 0 : index
    %c0_6 = arith.constant 0 : index
    %c0_7 = arith.constant 0 : index
    %3 = vector.load %arg4[%c0_5, %c0_6, %c0_7] : memref<3x128x128xf32, #tpu.memory_space<vmem>>, vector<1x128x128xf32>
    %4 = vector.shape_cast %3 : vector<1x128x128xf32> to vector<128x128xf32>
    %cst = arith.constant dense<0.000000e+00> : vector<64x128xf32>
    %5 = tpu.matmul %2, %4, %cst {dimension_numbers = #tpu.dot_dimension_numbers<[1], [0], [0], [1], [0, 0, 1, 1], [], []>} : vector<64x128xf32>, vector<128x128xf32>, vector<64x128xf32> -> vector<64x128xf32>
    %6 = vector.shape_cast %5 : vector<64x128xf32> to vector<4x16x128xf32>
    "tpu.trace_start"() <{level = 10 : i32, message = "bmn,bnf->bmf"}> : () -> ()
    %cst_8 = arith.constant dense<0.000000e+00> : vector<4x16x128xf32>
    %7 = tpu.matmul %0, %6, %cst_8 {dimension_numbers = #tpu.dot_dimension_numbers<[2], [1], [1], [2], [0, 0, 0, 1, 1, 2], [0], [0]>} : vector<4x16x16xf32>, vector<4x16x128xf32>, vector<4x16x128xf32> -> vector<4x16x128xf32>
    "tpu.trace_stop"() : () -> ()
    %8 = vector.shape_cast %7 : vector<4x16x128xf32> to vector<64x128xf32>
    %c0_9 = arith.constant 0 : index
    %c0_10 = arith.constant 0 : index
    %c0_11 = arith.constant 0 : index
    %9 = vector.load %arg5[%c0_9, %c0_10, %c0_11] : memref<3x1x128xf32, #tpu.memory_space<vmem>>, vector<1x1x128xf32>
    %10 = vector.shape_cast %9 : vector<1x1x128xf32> to vector<1x128xf32>
    %11 = vector.broadcast %10 : vector<1x128xf32> to vector<64x128xf32>
    %12 = arith.addf %8, %11 : vector<64x128xf32>
    %cst_12 = arith.constant 0.000000e+00 : f32
    %13 = vector.broadcast %cst_12 : f32 to vector<64x128xf32>
    %14 = arith.maximumf %12, %13 : vector<64x128xf32>
    %c1 = arith.constant 1 : index
    %c0_13 = arith.constant 0 : index
    %c0_14 = arith.constant 0 : index
    %15 = vector.load %arg4[%c1, %c0_13, %c0_14] : memref<3x128x128xf32, #tpu.memory_space<vmem>>, vector<1x128x128xf32>
    %16 = vector.shape_cast %15 : vector<1x128x128xf32> to vector<128x128xf32>
    %cst_15 = arith.constant dense<0.000000e+00> : vector<64x128xf32>
    %17 = tpu.matmul %14, %16, %cst_15 {dimension_numbers = #tpu.dot_dimension_numbers<[1], [0], [0], [1], [0, 0, 1, 1], [], []>} : vector<64x128xf32>, vector<128x128xf32>, vector<64x128xf32> -> vector<64x128xf32>
    %18 = vector.shape_cast %17 : vector<64x128xf32> to vector<4x16x128xf32>
    "tpu.trace_start"() <{level = 10 : i32, message = "bmn,bnf->bmf"}> : () -> ()
    %cst_16 = arith.constant dense<0.000000e+00> : vector<4x16x128xf32>
    %19 = tpu.matmul %0, %18, %cst_16 {dimension_numbers = #tpu.dot_dimension_numbers<[2], [1], [1], [2], [0, 0, 0, 1, 1, 2], [0], [0]>} : vector<4x16x16xf32>, vector<4x16x128xf32>, vector<4x16x128xf32> -> vector<4x16x128xf32>
    "tpu.trace_stop"() : () -> ()
    %20 = vector.shape_cast %19 : vector<4x16x128xf32> to vector<64x128xf32>
    %c1_17 = arith.constant 1 : index
    %c0_18 = arith.constant 0 : index
    %c0_19 = arith.constant 0 : index
    %21 = vector.load %arg5[%c1_17, %c0_18, %c0_19] : memref<3x1x128xf32, #tpu.memory_space<vmem>>, vector<1x1x128xf32>
    %22 = vector.shape_cast %21 : vector<1x1x128xf32> to vector<1x128xf32>
    %23 = vector.broadcast %22 : vector<1x128xf32> to vector<64x128xf32>
    %24 = arith.addf %20, %23 : vector<64x128xf32>
    %cst_20 = arith.constant 0.000000e+00 : f32
    %25 = vector.broadcast %cst_20 : f32 to vector<64x128xf32>
    %26 = arith.maximumf %24, %25 : vector<64x128xf32>
    %c2 = arith.constant 2 : index
    %c0_21 = arith.constant 0 : index
    %c0_22 = arith.constant 0 : index
    %27 = vector.load %arg4[%c2, %c0_21, %c0_22] : memref<3x128x128xf32, #tpu.memory_space<vmem>>, vector<1x128x128xf32>
    %28 = vector.shape_cast %27 : vector<1x128x128xf32> to vector<128x128xf32>
    %cst_23 = arith.constant dense<0.000000e+00> : vector<64x128xf32>
    %29 = tpu.matmul %26, %28, %cst_23 {dimension_numbers = #tpu.dot_dimension_numbers<[1], [0], [0], [1], [0, 0, 1, 1], [], []>} : vector<64x128xf32>, vector<128x128xf32>, vector<64x128xf32> -> vector<64x128xf32>
    %c0_24 = arith.constant 0 : index
    %c0_25 = arith.constant 0 : index
    %c0_26 = arith.constant 0 : index
    %30 = vector.load %arg3[%c0_24, %c0_25, %c0_26] : memref<4x2x16xf32, #tpu.memory_space<vmem>>, vector<4x2x16xf32>
    %31 = vector.shape_cast %29 : vector<64x128xf32> to vector<4x16x128xf32>
    "tpu.trace_start"() <{level = 10 : i32, message = "bgn,bnf->bgf"}> : () -> ()
    %cst_27 = arith.constant dense<0.000000e+00> : vector<4x2x128xf32>
    %32 = tpu.matmul %30, %31, %cst_27 {dimension_numbers = #tpu.dot_dimension_numbers<[2], [1], [1], [2], [0, 0, 0, 1, 1, 2], [0], [0]>} : vector<4x2x16xf32>, vector<4x16x128xf32>, vector<4x2x128xf32> -> vector<4x2x128xf32>
    "tpu.trace_stop"() : () -> ()
    %c2_28 = arith.constant 2 : index
    %c0_29 = arith.constant 0 : index
    %c0_30 = arith.constant 0 : index
    %33 = vector.load %arg5[%c2_28, %c0_29, %c0_30] : memref<3x1x128xf32, #tpu.memory_space<vmem>>, vector<1x1x128xf32>
    %34 = vector.shape_cast %33 : vector<1x1x128xf32> to vector<1x128xf32>
    %35 = vector.shape_cast %34 : vector<1x128xf32> to vector<1x1x128xf32>
    %36 = vector.broadcast %35 : vector<1x1x128xf32> to vector<4x2x128xf32>
    %37 = arith.addf %32, %36 : vector<4x2x128xf32>
    %c0_31 = arith.constant 0 : index
    %c0_32 = arith.constant 0 : index
    %c0_33 = arith.constant 0 : index
    %38 = vector.load %arg6[%c0_31, %c0_32, %c0_33] : memref<4x2x128xf32, #tpu.memory_space<vmem>>, vector<4x2x128xf32>
    tpu.vector_store %arg6[%c0_31, %c0_32, %c0_33], %37 {strides = array<i32>} : memref<4x2x128xf32, #tpu.memory_space<vmem>>, vector<4x2x128xf32>,
    return
  }
  func.func @transform_0(%arg0: i32) -> (i32, i32, i32) {
    %c0_i32 = arith.constant 0 : i32
    %c0_i32_0 = arith.constant 0 : i32
    %c0_i32_1 = arith.constant 0 : i32
    return %arg0, %c0_i32, %c0_i32_0 : i32, i32, i32
  }
  func.func @transform_1(%arg0: i32) -> (i32, i32, i32) {
    %c0_i32 = arith.constant 0 : i32
    %c0_i32_0 = arith.constant 0 : i32
    %c0_i32_1 = arith.constant 0 : i32
    return %arg0, %c0_i32, %c0_i32_0 : i32, i32, i32
  }
  func.func @transform_2(%arg0: i32) -> (i32, i32, i32) {
    %c0_i32 = arith.constant 0 : i32
    %c0_i32_0 = arith.constant 0 : i32
    %c0_i32_1 = arith.constant 0 : i32
    return %arg0, %c0_i32, %c0_i32_0 : i32, i32, i32
  }
  func.func @transform_3(%arg0: i32) -> (i32, i32, i32) {
    %c0_i32 = arith.constant 0 : i32
    %c0_i32_0 = arith.constant 0 : i32
    %c0_i32_1 = arith.constant 0 : i32
    %c0_i32_2 = arith.constant 0 : i32
    return %c0_i32, %c0_i32_0, %c0_i32_1 : i32, i32, i32
  }
  func.func @transform_4(%arg0: i32) -> (i32, i32, i32) {
    %c0_i32 = arith.constant 0 : i32
    %c0_i32_0 = arith.constant 0 : i32
    %c0_i32_1 = arith.constant 0 : i32
    %c0_i32_2 = arith.constant 0 : i32
    return %c0_i32, %c0_i32_0, %c0_i32_1 : i32, i32, i32
  }
  func.func @transform_5(%arg0: i32) -> (i32, i32, i32) {
    %c0_i32 = arith.constant 0 : i32
    %c0_i32_0 = arith.constant 0 : i32
    %c0_i32_1 = arith.constant 0 : i32
    return %arg0, %c0_i32, %c0_i32_0 : i32, i32, i32
  }
}

</mosaic_0001>

<llo_original>
// kernel: tpu_custom_call.1
$region0: #{tpu_custom_call.1}
  #allocation0 [shape = 'u32[]', space=smem, size = 0x4, offset = 0x4, fixed_abs, tag = 'smem constant byte address 0x4 - core index']
  #allocation1 [shape = 'u32[72,128]{1,0:T(1,128)}', space=vmem, size = 0x9000, scoped, tag = 'internal scratch']
  %s0 = inlined_call_operand.hbm [shape: f32[8,16,16], index: 0, kind: input, shape index: {}]
  %s1 = inlined_call_operand.hbm [shape: f32[8,16,128], index: 1, kind: input, shape index: {}]
  %s2 = inlined_call_operand.hbm [shape: f32[8,2,16], index: 2, kind: input, shape index: {}]
  %s3 = inlined_call_operand.hbm [shape: f32[3,128,128], index: 3, kind: input, shape index: {}]
  %s4 = inlined_call_operand.vmem [shape: f32[3,1,128], index: 4, kind: input, shape index: {}]
  %s5 = inlined_call_operand.hbm [shape: f32[8,2,128], index: 5, kind: output, shape index: {}]
  %s6 = sld [smem:[#allocation0]]
  $region69: #{tpu_custom_call.1} parent=0
    _
  %s8 = ssub.s32 1, %s6
  %s9 = scalar_select 0, %s8, %s6
  $region1: #{tpu_custom_call.1} parent=0
    #allocation2 [shape = 'u8[65536]{0}', space=vmem, size = 0x10000, scoped, tag = 'input window, operand 0']
    #allocation3 [shape = 's32[2]{0}', space=sflag, size = 0x8, scoped, tag = 'scoped memory for tpu_custom_call.1']
    #allocation4 [shape = 's32[2]{0}', space=sflag, size = 0x8, scoped, tag = 'scoped memory for tpu_custom_call.1']
    #allocation5 [shape = 'u8[65536]{0}', space=vmem, size = 0x10000, scoped, tag = 'input window, operand 1']
    #allocation6 [shape = 's32[2]{0}', space=sflag, size = 0x8, scoped, tag = 'scoped memory for tpu_custom_call.1']
    #allocation7 [shape = 'u8[8192]{0}', space=vmem, size = 0x2000, scoped, tag = 'input window, operand 2']
    #allocation8 [shape = 'u8[196608]{0}', space=vmem, size = 0x30000, scoped, tag = 'input window, operand 3, single buffered']
    #allocation9 [shape = 's32[1]{0}', space=sflag, size = 0x4, scoped, tag = 'scoped memory for tpu_custom_call.1']
    #allocation10 [shape = 'u8[8192]{0}', space=vmem, size = 0x2000, scoped, tag = 'output window, operand 0']
    %10 = vsyncpa [#allocation3], 0
    %s11 = scalar_lea.sflag [#allocation3], 1
    %12 = vsyncpa %s11, 0
    %13 = vsyncpa [#allocation6], 0
    %s14 = scalar_lea.sflag [#allocation6], 1
    %15 = vsyncpa %s14, 0
    %16 = vsyncpa [#allocation9], 0
    %17 = vsyncpa [#allocation4], 0
    %s18 = scalar_lea.sflag [#allocation4], 1
    %19 = vsyncpa %s18, 0
    loop: start=0, step=1, limit=4
    $region2: #{tpu_custom_call.1} parent=1 // loop_pre_header
      _
    $region3: #{tpu_custom_call.1} parent=1 // loop_header
      %s21 = sphi 0, %s25
      %p22 = scmp.ge.s32.totalorder %s21, 4
      %s31 = sphi 0, %s33
      %s34 = sphi 0, %s31
      %s35 = sphi 0, %s34
      %s51 = sphi 0, %s35
      %s57 = sphi 0, %s59
      %s60 = sphi 0, %s57
      %s61 = sphi 0, %s60
      %s77 = sphi 0, %s61
      %s83 = sphi 0, %s85
      %s86 = sphi 0, %s83
      %s87 = sphi 0, %s86
      %s103 = sphi 0, %s87
      %s107 = sphi 0, %s107
      %s109 = sphi 0, %s107
      %s110 = sphi 0, %s109
      %s124 = sphi 0, %s110
      %s128 = sphi 0, %s128
      %s130 = sphi 0, %s128
      %s131 = sphi 0, %s130
      %s145 = sphi 0, %s131
      %s151 = sphi 0, %s153
      %s154 = sphi 0, %s151
      %s155 = sphi 0, %s154
      %s171 = sphi 0, %s155
    $region4: #{tpu_custom_call.1} parent=1 // loop_header_branch
      %24 = sbr.rel (%p22) target = $region8
    $region5: #{tpu_custom_call.1} parent=1 // loop_body
      %s26 = ssub.s32 %s21, 1
      %s27 = ssub.s32 %s21, 2
      %s28 = sadd.s32 %s21, 1
      %s29 = ssub.s32 %s21, %s28
      %p30 = scmp.eq.s32.totalorder %s29, 0
      %s32 = sadd.s32 %s31, 1
      %s33 = scalar_select %p30, %s31, %s32
      %p36 = pneg %p30
      %p37 = scmp.eq.s32.totalorder %s21, 1
      %p38 = por %p36, %p37
      %p39 = scmp.ne.s32.totalorder %s31, %s34
      %p40 = scmp.eq.s32.totalorder %s21, 0
      %p41 = por %p39, %p40
      %p42 = scmp.ne.s32.totalorder %s31, %s34
      %p43 = scmp.eq.s32.totalorder %s26, 1
      %p44 = por %p42, %p43
      %p45 = scmp.ne.s32.totalorder %s34, %s35
      %p46 = scmp.eq.s32.totalorder %s26, 0
      %p47 = por %p45, %p46
      %p48 = scmp.ne.s32.totalorder %s34, %s35
      %p49 = scmp.eq.s32.totalorder %s27, 1
      %p50 = por %p48, %p49
      %p52 = scmp.ne.s32.totalorder %s35, %s51
      %p53 = scmp.eq.s32.totalorder %s27, 0
      %p54 = por %p52, %p53
      %s55 = ssub.s32 %s21, %s28
      %p56 = scmp.eq.s32.totalorder %s55, 0
      %s58 = sadd.s32 %s57, 1
      %s59 = scalar_select %p56, %s57, %s58
      %p62 = pneg %p56
      %p63 = scmp.eq.s32.totalorder %s21, 1
      %p64 = por %p62, %p63
      %p65 = scmp.ne.s32.totalorder %s57, %s60
      %p66 = scmp.eq.s32.totalorder %s21, 0
      %p67 = por %p65, %p66
      %p68 = scmp.ne.s32.totalorder %s57, %s60
      %p69 = scmp.eq.s32.totalorder %s26, 1
      %p70 = por %p68, %p69
      %p71 = scmp.ne.s32.totalorder %s60, %s61
      %p72 = scmp.eq.s32.totalorder %s26, 0
      %p73 = por %p71, %p72
      %p74 = scmp.ne.s32.totalorder %s60, %s61
      %p75 = scmp.eq.s32.totalorder %s27, 1
      %p76 = por %p74, %p75
      %p78 = scmp.ne.s32.totalorder %s61, %s77
      %p79 = scmp.eq.s32.totalorder %s27, 0
      %p80 = por %p78, %p79
      %s81 = ssub.s32 %s21, %s28
      %p82 = scmp.eq.s32.totalorder %s81, 0
      %s84 = sadd.s32 %s83, 1
      %s85 = scalar_select %p82, %s83, %s84
      %p88 = pneg %p82
      %p89 = scmp.eq.s32.totalorder %s21, 1
      %p90 = por %p88, %p89
      %p91 = scmp.ne.s32.totalorder %s83, %s86
      %p92 = scmp.eq.s32.totalorder %s21, 0
      %p93 = por %p91, %p92
      %p94 = scmp.ne.s32.totalorder %s83, %s86
      %p95 = scmp.eq.s32.totalorder %s26, 1
      %p96 = por %p94, %p95
      %p97 = scmp.ne.s32.totalorder %s86, %s87
      %p98 = scmp.eq.s32.totalorder %s26, 0
      %p99 = por %p97, %p98
      %p100 = scmp.ne.s32.totalorder %s86, %s87
      %p101 = scmp.eq.s32.totalorder %s27, 1
      %p102 = por %p100, %p101
      %p104 = scmp.ne.s32.totalorder %s87, %s103
      %p105 = scmp.eq.s32.totalorder %s27, 0
      %p106 = por %p104, %p105
      %s108 = sadd.s32 %s107, 1
      %p111 = scmp.eq.s32.totalorder %s21, 1
      %p112 = scmp.ne.s32.totalorder %s107, %s109
      %p113 = scmp.eq.s32.totalorder %s21, 0
      %p114 = por %p112, %p113
      %p115 = scmp.ne.s32.totalorder %s107, %s109
      %p116 = scmp.eq.s32.totalorder %s26, 1
      %p117 = por %p115, %p116
      %p118 = scmp.ne.s32.totalorder %s109, %s110
      %p119 = scmp.eq.s32.totalorder %s26, 0
      %p120 = por %p118, %p119
      %p121 = scmp.ne.s32.totalorder %s109, %s110
      %p122 = scmp.eq.s32.totalorder %s27, 1
      %p123 = por %p121, %p122
      %p125 = scmp.ne.s32.totalorder %s110, %s124
      %p126 = scmp.eq.s32.totalorder %s27, 0
      %p127 = por %p125, %p126
      %s129 = sadd.s32 %s128, 1
      %p132 = scmp.eq.s32.totalorder %s21, 1
      %p133 = scmp.ne.s32.totalorder %s128, %s130
      %p134 = scmp.eq.s32.totalorder %s21, 0
      %p135 = por %p133, %p134
      %p136 = scmp.ne.s32.totalorder %s128, %s130
      %p137 = scmp.eq.s32.totalorder %s26, 1
      %p138 = por %p136, %p137
      %p139 = scmp.ne.s32.totalorder %s130, %s131
      %p140 = scmp.eq.s32.totalorder %s26, 0
      %p141 = por %p139, %p140
      %p142 = scmp.ne.s32.totalorder %s130, %s131
      %p143 = scmp.eq.s32.totalorder %s27, 1
      %p144 = por %p142, %p143
      %p146 = scmp.ne.s32.totalorder %s131, %s145
      %p147 = scmp.eq.s32.totalorder %s27, 0
      %p148 = por %p146, %p147
      %s149 = ssub.s32 %s21, %s28
      %p150 = scmp.eq.s32.totalorder %s149, 0
      %s152 = sadd.s32 %s151, 1
      %s153 = scalar_select %p150, %s151, %s152
      %p156 = pneg %p150
      %p157 = scmp.eq.s32.totalorder %s21, 1
      %p158 = por %p156, %p157
      %p159 = scmp.ne.s32.totalorder %s151, %s154
      %p160 = scmp.eq.s32.totalorder %s21, 0
      %p161 = por %p159, %p160
      %p162 = scmp.ne.s32.totalorder %s151, %s154
      %p163 = scmp.eq.s32.totalorder %s26, 1
      %p164 = por %p162, %p163
      %p165 = scmp.ne.s32.totalorder %s154, %s155
      %p166 = scmp.eq.s32.totalorder %s26, 0
      %p167 = por %p165, %p166
      %p168 = scmp.ne.s32.totalorder %s154, %s155
      %p169 = scmp.eq.s32.totalorder %s27, 1
      %p170 = por %p168, %p169
      %p172 = scmp.ne.s32.totalorder %s155, %s171
      %p173 = scmp.eq.s32.totalorder %s27, 0
      %p174 = por %p172, %p173
      %p175 = scmp.le.s32.totalorder 1, %s21
      %p176 = scmp.lt.s32.totalorder %s21, 3
      %p177 = pnand %p175, %p176
      %p178 = pneg %p177
      // Predicated region
      $region9: #{tpu_custom_call.1} parent=5 // pred_check
        _
      $region10: #{tpu_custom_call.1} parent=5 // pred_check_branch
        %180 = sbr.rel (%p177) target = $region12
      $region11: #{tpu_custom_call.1} parent=5 // pred_region
        %s181 = ssub.s32 %s21, 1
        // Predicated region
        $region13: #{tpu_custom_call.1} parent=11 // pred_check
          %p182 = pneg %p120
        $region14: #{tpu_custom_call.1} parent=11 // pred_check_branch
          %184 = sbr.rel (%p182) target = $region16
        $region15: #{tpu_custom_call.1} parent=11 // pred_region
          %186 = vsyncadd [#allocation9], 0
          %s187 = sshll.u32 %s3, 4
          %s188 = int_to_ptr.hbm [resolvable:$true] %s187
          %s189 = sshll.u32 [#allocation8], 4
          %s190 = int_to_ptr.vmem [resolvable:$true] %s189
          %195 = dma.hbm_to_vmem [thread:$0]  %s188, 6144, %s190, [#allocation9], 128, 128, 8
        $region16: #{tpu_custom_call.1} parent=11 // pred_fallthru
          _
        // Predicated region
        $region17: #{tpu_custom_call.1} parent=11 // pred_check
          %p196 = pneg %p141
        $region18: #{tpu_custom_call.1} parent=11 // pred_check_branch
          %198 = sbr.rel (%p196) target = $region20
        $region19: #{tpu_custom_call.1} parent=11 // pred_region
          _
        $region20: #{tpu_custom_call.1} parent=11 // pred_fallthru
          _
      $region12: #{tpu_custom_call.1} parent=5 // pred_fallthru
        _
      %p199 = scmp.lt.s32.totalorder %s21, 2
      // Predicated region
      $region21: #{tpu_custom_call.1} parent=5 // pred_check
        %p200 = pneg %p199
      $region22: #{tpu_custom_call.1} parent=5 // pred_check_branch
        %202 = sbr.rel (%p200) target = $region24
      $region23: #{tpu_custom_call.1} parent=5 // pred_region
        // Predicated region
        $region25: #{tpu_custom_call.1} parent=23 // pred_check
          %p203 = pneg %p41
        $region26: #{tpu_custom_call.1} parent=23 // pred_check_branch
          %205 = sbr.rel (%p203) target = $region28
        $region27: #{tpu_custom_call.1} parent=23 // pred_region
          %s206 = sand.u32 %s31, 1
          %s207 = scalar_lea.sflag [#allocation3], %s206
          %s208 = sand.u32 %s31, 1
          %s209 = smul.addr %s208, 64
          %s210 = scalar_lea.vmem [#allocation2], %s209
          %s211 = smul.u32 4, %s21
          %213 = vsyncadd %s207, 0
          %s214 = smul.addr %s211, 2
          %s215 = smul.addr %s214, 8
          %s216 = scalar_lea.hbm %s0, %s215
          %s217 = sshll.u32 %s216, 4
          %s218 = int_to_ptr.hbm [resolvable:$true] %s217
          %s219 = sshll.u32 %s210, 4
          %s220 = int_to_ptr.vmem [resolvable:$true] %s219
          %225 = dma.hbm_to_vmem [thread:$0]  %s218, 1024, %s220, %s207, 128, 128, 8
        $region28: #{tpu_custom_call.1} parent=23 // pred_fallthru
          _
        // Predicated region
        $region29: #{tpu_custom_call.1} parent=23 // pred_check
          %p226 = pneg %p67
        $region30: #{tpu_custom_call.1} parent=23 // pred_check_branch
          %228 = sbr.rel (%p226) target = $region32
        $region31: #{tpu_custom_call.1} parent=23 // pred_region
          %s229 = sand.u32 %s21, 1
          %s230 = scalar_lea.sflag [#allocation6], %s229
          %s231 = sand.u32 %s57, 1
          %s232 = smul.addr %s231, 64
          %s233 = scalar_lea.vmem [#allocation5], %s232
          %s234 = smul.u32 4, %s21
          %236 = vsyncadd %s230, 0
          %s237 = smul.addr %s234, 2
          %s238 = smul.addr %s237, 8
          %s239 = scalar_lea.hbm %s1, %s238
          %s240 = sshll.u32 %s239, 4
          %s241 = int_to_ptr.hbm [resolvable:$true] %s240
          %s242 = sshll.u32 %s233, 4
          %s243 = int_to_ptr.vmem [resolvable:$true] %s242
          %248 = dma.hbm_to_vmem [thread:$0]  %s241, 1024, %s243, %s230, 128, 128, 8
        $region32: #{tpu_custom_call.1} parent=23 // pred_fallthru
          _
        // Predicated region
        $region33: #{tpu_custom_call.1} parent=23 // pred_check
          %p249 = pneg %p93
        $region34: #{tpu_custom_call.1} parent=23 // pred_check_branch
          %251 = sbr.rel (%p249) target = $region36
        $region35: #{tpu_custom_call.1} parent=23 // pred_region
          %s252 = sand.u32 %s21, 1
          %s253 = scalar_lea.sflag [#allocation6], %s252
          %s254 = sand.u32 %s83, 1
          %s255 = smul.addr %s254, 8
          %s256 = scalar_lea.vmem [#allocation7], %s255
          %s257 = smul.u32 4, %s21
          %259 = vsyncadd %s253, 0
          %s260 = smul.addr %s257, 2
          %s261 = scalar_lea.hbm %s2, %s260
          %s262 = sshll.u32 %s261, 4
          %s263 = int_to_ptr.hbm [resolvable:$true] %s262
          %s264 = sshll.u32 %s256, 4
          %s265 = int_to_ptr.vmem [resolvable:$true] %s264
          %270 = dma.hbm_to_vmem [thread:$0]  %s263, 128, %s265, %s253, 32, 32, 2
        $region36: #{tpu_custom_call.1} parent=23 // pred_fallthru
          _
      $region24: #{tpu_custom_call.1} parent=5 // pred_fallthru
        _
      %p271 = scmp.le.s32.totalorder 1, %s21
      %p272 = scmp.lt.s32.totalorder %s21, 3
      %p273 = pnand %p271, %p272
      %p274 = pneg %p273
      // Predicated region
      $region37: #{tpu_custom_call.1} parent=5 // pred_check
        _
      $region38: #{tpu_custom_call.1} parent=5 // pred_check_branch
        %276 = sbr.rel (%p273) target = $region40
      $region39: #{tpu_custom_call.1} parent=5 // pred_region
        %s277 = ssub.s32 %s21, 1
        %s278 = sand.u32 %s34, 1
        %s279 = scalar_lea.sflag [#allocation3], %s278
        %s280 = sand.u32 %s34, 1
        %s281 = smul.addr %s280, 64
        %s282 = scalar_lea.vmem [#allocation2], %s281
        // Predicated region
        $region41: #{tpu_custom_call.1} parent=39 // pred_check
          %p283 = pneg %p47
        $region42: #{tpu_custom_call.1} parent=39 // pred_check_branch
          %285 = sbr.rel (%p283) target = $region44
        $region43: #{tpu_custom_call.1} parent=39 // pred_region
          %287 = dma.done %s279, 1024
        $region44: #{tpu_custom_call.1} parent=39 // pred_fallthru
          _
        %s288 = sand.u32 %s26, 1
        %s289 = scalar_lea.sflag [#allocation6], %s288
        %s290 = sand.u32 %s60, 1
        %s291 = smul.addr %s290, 64
        %s292 = scalar_lea.vmem [#allocation5], %s291
        // Predicated region
        $region45: #{tpu_custom_call.1} parent=39 // pred_check
          %p293 = pneg %p73
        $region46: #{tpu_custom_call.1} parent=39 // pred_check_branch
          %295 = sbr.rel (%p293) target = $region48
        $region47: #{tpu_custom_call.1} parent=39 // pred_region
          %297 = dma.done %s289, 1024
        $region48: #{tpu_custom_call.1} parent=39 // pred_fallthru
          _
        %s298 = sand.u32 %s26, 1
        %s299 = scalar_lea.sflag [#allocation6], %s298
        %s300 = sand.u32 %s86, 1
        %s301 = smul.addr %s300, 8
        %s302 = scalar_lea.vmem [#allocation7], %s301
        // Predicated region
        $region49: #{tpu_custom_call.1} parent=39 // pred_check
          %p303 = pneg %p99
        $region50: #{tpu_custom_call.1} parent=39 // pred_check_branch
          %305 = sbr.rel (%p303) target = $region52
        $region51: #{tpu_custom_call.1} parent=39 // pred_region
          %307 = dma.done %s299, 128
        $region52: #{tpu_custom_call.1} parent=39 // pred_fallthru
          _
        // Predicated region
        $region53: #{tpu_custom_call.1} parent=39 // pred_check
          %p308 = pneg %p120
        $region54: #{tpu_custom_call.1} parent=39 // pred_check_branch
          %310 = sbr.rel (%p308) target = $region56
        $region55: #{tpu_custom_call.1} parent=39 // pred_region
          %312 = dma.done [#allocation9], 6144
        $region56: #{tpu_custom_call.1} parent=39 // pred_fallthru
          _
        %s313 = sand.u32 %s34, 1
        %s314 = scalar_lea.sflag [#allocation3], %s313
        %s315 = sand.u32 %s34, 1
        %s316 = smul.addr %s315, 64
        %s317 = scalar_lea.vmem [#allocation2], %s316
        %p318 = pneg %p47
        %p319 = pneg %p44
        %s320 = sand.u32 %s26, 1
        %s321 = scalar_lea.sflag [#allocation6], %s320
        %s322 = sand.u32 %s60, 1
        %s323 = smul.addr %s322, 64
        %s324 = scalar_lea.vmem [#allocation5], %s323
        %p325 = pneg %p73
        %p326 = pneg %p70
        %s327 = sand.u32 %s26, 1
        %s328 = scalar_lea.sflag [#allocation6], %s327
        %s329 = sand.u32 %s86, 1
        %s330 = smul.addr %s329, 8
        %s331 = scalar_lea.vmem [#allocation7], %s330
        %p332 = pneg %p99
        %p333 = pneg %p96
        %p334 = pneg %p120
        %p335 = pneg %p117
        %p336 = pneg %p141
        %p337 = pneg %p138
        %p338 = pneg %p167
        %p339 = pneg %p164
        %s340 = sand.u32 %s154, 1
        %s341 = scalar_lea.sflag [#allocation4], %s340
        %s342 = sand.u32 %s154, 1
        %s343 = smul.addr %s342, 8
        %s344 = scalar_lea.vmem [#allocation10], %s343
        %s345 = smul.u32 4, %s26
        %s346 = smul.u32 4, %s26
        %s347 = smul.u32 4, %s26
        %s348 = smul.u32 4, %s26
        %v349 = vld [vmem:[%s282] sm:$0xff]
        %v350 = vld [vmem:[%s282 + $0x8] sm:$0xff]
        %v351 = vld [vmem:[%s282 + $0x10] sm:$0xff]
        %v352 = vld [vmem:[%s282 + $0x18] sm:$0xff]
        %v353 = vld [vmem:[%s282 + $0x20] sm:$0xff]
        %v354 = vld [vmem:[%s282 + $0x28] sm:$0xff]
        %v355 = vld [vmem:[%s282 + $0x30] sm:$0xff]
        %v356 = vld [vmem:[%s282 + $0x38] sm:$0xff]
        %v357 = vld [vmem:[%s292] sm:$0xff]
        %v358 = vld [vmem:[%s292 + $0x8] sm:$0xff]
        %v359 = vld [vmem:[%s292 + $0x10] sm:$0xff]
        %v360 = vld [vmem:[%s292 + $0x18] sm:$0xff]
        %v361 = vld [vmem:[%s292 + $0x20] sm:$0xff]
        %v362 = vld [vmem:[%s292 + $0x28] sm:$0xff]
        %v363 = vld [vmem:[%s292 + $0x30] sm:$0xff]
        %v364 = vld [vmem:[%s292 + $0x38] sm:$0xff]
        %v365 = vld [vmem:[#allocation8] sm:$0xff]
        %v366 = vld [vmem:[#allocation8 + $0x8] sm:$0xff]
        %v367 = vld [vmem:[#allocation8 + $0x10] sm:$0xff]
        %v368 = vld [vmem:[#allocation8 + $0x18] sm:$0xff]
        %v369 = vld [vmem:[#allocation8 + $0x20] sm:$0xff]
        %v370 = vld [vmem:[#allocation8 + $0x28] sm:$0xff]
        %v371 = vld [vmem:[#allocation8 + $0x30] sm:$0xff]
        %v372 = vld [vmem:[#allocation8 + $0x38] sm:$0xff]
        %v373 = vld [vmem:[#allocation8 + $0x40] sm:$0xff]
        %v374 = vld [vmem:[#allocation8 + $0x48] sm:$0xff]
        %v375 = vld [vmem:[#allocation8 + $0x50] sm:$0xff]
        %v376 = vld [vmem:[#allocation8 + $0x58] sm:$0xff]
        %v377 = vld [vmem:[#allocation8 + $0x60] sm:$0xff]
        %v378 = vld [vmem:[#allocation8 + $0x68] sm:$0xff]
        %v379 = vld [vmem:[#allocation8 + $0x70] sm:$0xff]
        %v380 = vld [vmem:[#allocation8 + $0x78] sm:$0xff]
        %381 = vmatpush.msra.mxu0 %v380
        %382 = vmatpush.msra.mxu0 %v379
        %383 = vmatpush.msra.mxu0 %v378
        %384 = vmatpush.msra.mxu0 %v377
        %385 = vmatpush.msra.mxu0 %v376
        %386 = vmatpush.msra.mxu0 %v375
        %387 = vmatpush.msra.mxu0 %v374
        %388 = vmatpush.msra.mxu0 %v373
        %389 = vmatpush.msra.mxu0 %v372
        %390 = vmatpush.msra.mxu0 %v371
        %391 = vmatpush.msra.mxu0 %v370
        %392 = vmatpush.msra.mxu0 %v369
        %393 = vmatpush.msra.mxu0 %v368
        %394 = vmatpush.msra.mxu0 %v367
        %395 = vmatpush.msra.mxu0 %v366
        %396 = vmatpush.msra.mxu0 %v365
        %397 = vmatmul.f32.gmra.mxu0 %v357
        %v398 = vpop.f32.mrf.mxu0
        %v399 = vadd.f32 0.0, %v398
        %400 = vmatmul.f32.gmra.mxu0 %v358
        %v401 = vpop.f32.mrf.mxu0
        %v402 = vadd.f32 0.0, %v401
        %403 = vmatmul.f32.gmra.mxu0 %v359
        %v404 = vpop.f32.mrf.mxu0
        %v405 = vadd.f32 0.0, %v404
        %406 = vmatmul.f32.gmra.mxu0 %v360
        %v407 = vpop.f32.mrf.mxu0
        %v408 = vadd.f32 0.0, %v407
        %409 = vmatmul.f32.gmra.mxu0 %v361
        %v410 = vpop.f32.mrf.mxu0
        %v411 = vadd.f32 0.0, %v410
        %412 = vmatmul.f32.gmra.mxu0 %v362
        %v413 = vpop.f32.mrf.mxu0
        %v414 = vadd.f32 0.0, %v413
        %415 = vmatmul.f32.gmra.mxu0 %v363
        %v416 = vpop.f32.mrf.mxu0
        %v417 = vadd.f32 0.0, %v416
        %418 = vmatmul.f32.gmra.mxu0 %v364
        %v419 = vpop.f32.mrf.mxu0
        %v420 = vadd.f32 0.0, %v419
        %421 = vdwg.mxu0
        %vm422 = vcmask 130048
        %v424 = vsel %vm422, %v349, 0
        %v427 = vsel %vm422, %v350, 0
        %429 = vmatpush.msra.mxu0 0.0
        %430 = vmatpush.msra.mxu0 0.0
        %431 = vmatpush.msra.mxu0 0.0
        %432 = vmatpush.msra.mxu0 0.0
        %433 = vmatpush.msra.mxu0 0.0
        %434 = vmatpush.msra.mxu0 0.0
        %435 = vmatpush.msra.mxu0 0.0
        %436 = vmatpush.msra.mxu0 0.0
        %437 = vmatpush.msra.mxu0 0.0
        %438 = vmatpush.msra.mxu0 0.0
        %439 = vmatpush.msra.mxu0 0.0
        %440 = vmatpush.msra.mxu0 0.0
        %441 = vmatpush.msra.mxu0 0.0
        %442 = vmatpush.msra.mxu0 0.0
        %443 = vmatpush.msra.mxu0 %v402
        %444 = vmatpush.msra.mxu0 %v399
        %445 = vmatmul.f32.gmra.mxu0 %v424
        %v446 = vpop.f32.mrf.mxu0
        %v447 = vadd.f32 0.0, %v446
        %448 = vmatmul.f32.gmra.mxu0 %v427
        %v449 = vpop.f32.mrf.mxu0
        %v450 = vadd.f32 0.0, %v449
        %451 = vdwg.mxu0
        %v453 = vsel %vm422, %v351, 0
        %v456 = vsel %vm422, %v352, 0
        %458 = vmatpush.msra.mxu0 0.0
        %459 = vmatpush.msra.mxu0 0.0
        %460 = vmatpush.msra.mxu0 0.0
        %461 = vmatpush.msra.mxu0 0.0
        %462 = vmatpush.msra.mxu0 0.0
        %463 = vmatpush.msra.mxu0 0.0
        %464 = vmatpush.msra.mxu0 0.0
        %465 = vmatpush.msra.mxu0 0.0
        %466 = vmatpush.msra.mxu0 0.0
        %467 = vmatpush.msra.mxu0 0.0
        %468 = vmatpush.msra.mxu0 0.0
        %469 = vmatpush.msra.mxu0 0.0
        %470 = vmatpush.msra.mxu0 0.0
        %471 = vmatpush.msra.mxu0 0.0
        %472 = vmatpush.msra.mxu0 %v408
        %473 = vmatpush.msra.mxu0 %v405
        %474 = vmatmul.f32.gmra.mxu0 %v453
        %v475 = vpop.f32.mrf.mxu0
        %v476 = vadd.f32 0.0, %v475
        %477 = vmatmul.f32.gmra.mxu0 %v456
        %v478 = vpop.f32.mrf.mxu0
        %v479 = vadd.f32 0.0, %v478
        %480 = vdwg.mxu0
        %v482 = vsel %vm422, %v353, 0
        %v485 = vsel %vm422, %v354, 0
        %487 = vmatpush.msra.mxu0 0.0
        %488 = vmatpush.msra.mxu0 0.0
        %489 = vmatpush.msra.mxu0 0.0
        %490 = vmatpush.msra.mxu0 0.0
        %491 = vmatpush.msra.mxu0 0.0
        %492 = vmatpush.msra.mxu0 0.0
        %493 = vmatpush.msra.mxu0 0.0
        %494 = vmatpush.msra.mxu0 0.0
        %495 = vmatpush.msra.mxu0 0.0
        %496 = vmatpush.msra.mxu0 0.0
        %497 = vmatpush.msra.mxu0 0.0
        %498 = vmatpush.msra.mxu0 0.0
        %499 = vmatpush.msra.mxu0 0.0
        %500 = vmatpush.msra.mxu0 0.0
        %501 = vmatpush.msra.mxu0 %v414
        %502 = vmatpush.msra.mxu0 %v411
        %503 = vmatmul.f32.gmra.mxu0 %v482
        %v504 = vpop.f32.mrf.mxu0
        %v505 = vadd.f32 0.0, %v504
        %506 = vmatmul.f32.gmra.mxu0 %v485
        %v507 = vpop.f32.mrf.mxu0
        %v508 = vadd.f32 0.0, %v507
        %509 = vdwg.mxu0
        %v511 = vsel %vm422, %v355, 0
        %v514 = vsel %vm422, %v356, 0
        %516 = vmatpush.msra.mxu0 0.0
        %517 = vmatpush.msra.mxu0 0.0
        %518 = vmatpush.msra.mxu0 0.0
        %519 = vmatpush.msra.mxu0 0.0
        %520 = vmatpush.msra.mxu0 0.0
        %521 = vmatpush.msra.mxu0 0.0
        %522 = vmatpush.msra.mxu0 0.0
        %523 = vmatpush.msra.mxu0 0.0
        %524 = vmatpush.msra.mxu0 0.0
        %525 = vmatpush.msra.mxu0 0.0
        %526 = vmatpush.msra.mxu0 0.0
        %527 = vmatpush.msra.mxu0 0.0
        %528 = vmatpush.msra.mxu0 0.0
        %529 = vmatpush.msra.mxu0 0.0
        %530 = vmatpush.msra.mxu0 %v420
        %531 = vmatpush.msra.mxu0 %v417
        %532 = vmatmul.f32.gmra.mxu0 %v511
        %v533 = vpop.f32.mrf.mxu0
        %v534 = vadd.f32 0.0, %v533
        %535 = vmatmul.f32.gmra.mxu0 %v514
        %v536 = vpop.f32.mrf.mxu0
        %v537 = vadd.f32 0.0, %v536
        %538 = vdwg.mxu0
        %v539 = vld [vmem:[%s4] sm:$0x1]
        %v541 = vperm.slane %v539, 0
        %v543 = vadd.f32 %v447, %v541
        %v544 = vadd.f32 %v450, %v541
        %v545 = vadd.f32 %v476, %v541
        %v546 = vadd.f32 %v479, %v541
        %v547 = vadd.f32 %v505, %v541
        %v548 = vadd.f32 %v508, %v541
        %v549 = vadd.f32 %v534, %v541
        %v550 = vadd.f32 %v537, %v541
        %v551 = vmax.f32 %v543, 0.0
        %v552 = vmax.f32 %v544, 0.0
        %v553 = vmax.f32 %v545, 0.0
        %v554 = vmax.f32 %v546, 0.0
        %v555 = vmax.f32 %v547, 0.0
        %v556 = vmax.f32 %v548, 0.0
        %v557 = vmax.f32 %v549, 0.0
        %v558 = vmax.f32 %v550, 0.0
        %s559 = scalar_lea.vmem [#allocation8], 128
        %v560 = vld [vmem:[%s559] sm:$0xff]
        %v561 = vld [vmem:[%s559 + $0x8] sm:$0xff]
        %v562 = vld [vmem:[%s559 + $0x10] sm:$0xff]
        %v563 = vld [vmem:[%s559 + $0x18] sm:$0xff]
        %v564 = vld [vmem:[%s559 + $0x20] sm:$0xff]
        %v565 = vld [vmem:[%s559 + $0x28] sm:$0xff]
        %v566 = vld [vmem:[%s559 + $0x30] sm:$0xff]
        %v567 = vld [vmem:[%s559 + $0x38] sm:$0xff]
        %v568 = vld [vmem:[%s559 + $0x40] sm:$0xff]
        %v569 = vld [vmem:[%s559 + $0x48] sm:$0xff]
        %v570 = vld [vmem:[%s559 + $0x50] sm:$0xff]
        %v571 = vld [vmem:[%s559 + $0x58] sm:$0xff]
        %v572 = vld [vmem:[%s559 + $0x60] sm:$0xff]
        %v573 = vld [vmem:[%s559 + $0x68] sm:$0xff]
        %v574 = vld [vmem:[%s559 + $0x70] sm:$0xff]
        %v575 = vld [vmem:[%s559 + $0x78] sm:$0xff]
        %576 = vmatpush.msra.mxu0 %v575
        %577 = vmatpush.msra.mxu0 %v574
        %578 = vmatpush.msra.mxu0 %v573
        %579 = vmatpush.msra.mxu0 %v572
        %580 = vmatpush.msra.mxu0 %v571
        %581 = vmatpush.msra.mxu0 %v570
        %582 = vmatpush.msra.mxu0 %v569
        %583 = vmatpush.msra.mxu0 %v568
        %584 = vmatpush.msra.mxu0 %v567
        %585 = vmatpush.msra.mxu0 %v566
        %586 = vmatpush.msra.mxu0 %v565
        %587 = vmatpush.msra.mxu0 %v564
        %588 = vmatpush.msra.mxu0 %v563
        %589 = vmatpush.msra.mxu0 %v562
        %590 = vmatpush.msra.mxu0 %v561
        %591 = vmatpush.msra.mxu0 %v560
        %592 = vmatmul.f32.gmra.mxu0 %v551
        %v593 = vpop.f32.mrf.mxu0
        %v594 = vadd.f32 0.0, %v593
        %595 = vmatmul.f32.gmra.mxu0 %v552
        %v596 = vpop.f32.mrf.mxu0
        %v597 = vadd.f32 0.0, %v596
        %598 = vmatmul.f32.gmra.mxu0 %v553
        %v599 = vpop.f32.mrf.mxu0
        %v600 = vadd.f32 0.0, %v599
        %601 = vmatmul.f32.gmra.mxu0 %v554
        %v602 = vpop.f32.mrf.mxu0
        %v603 = vadd.f32 0.0, %v602
        %604 = vmatmul.f32.gmra.mxu0 %v555
        %v605 = vpop.f32.mrf.mxu0
        %v606 = vadd.f32 0.0, %v605
        %607 = vmatmul.f32.gmra.mxu0 %v556
        %v608 = vpop.f32.mrf.mxu0
        %v609 = vadd.f32 0.0, %v608
        %610 = vmatmul.f32.gmra.mxu0 %v557
        %v611 = vpop.f32.mrf.mxu0
        %v612 = vadd.f32 0.0, %v611
        %613 = vmatmul.f32.gmra.mxu0 %v558
        %v614 = vpop.f32.mrf.mxu0
        %v615 = vadd.f32 0.0, %v614
        %616 = vdwg.mxu0
        %617 = vmatpush.msra.mxu0 0.0
        %618 = vmatpush.msra.mxu0 0.0
        %619 = vmatpush.msra.mxu0 0.0
        %620 = vmatpush.msra.mxu0 0.0
        %621 = vmatpush.msra.mxu0 0.0
        %622 = vmatpush.msra.mxu0 0.0
        %623 = vmatpush.msra.mxu0 0.0
        %624 = vmatpush.msra.mxu0 0.0
        %625 = vmatpush.msra.mxu0 0.0
        %626 = vmatpush.msra.mxu0 0.0
        %627 = vmatpush.msra.mxu0 0.0
        %628 = vmatpush.msra.mxu0 0.0
        %629 = vmatpush.msra.mxu0 0.0
        %630 = vmatpush.msra.mxu0 0.0
        %631 = vmatpush.msra.mxu0 %v597
        %632 = vmatpush.msra.mxu0 %v594
        %633 = vmatmul.f32.gmra.mxu0 %v424
        %v634 = vpop.f32.mrf.mxu0
        %v635 = vadd.f32 0.0, %v634
        %636 = vmatmul.f32.gmra.mxu0 %v427
        %v637 = vpop.f32.mrf.mxu0
        %v638 = vadd.f32 0.0, %v637
        %639 = vdwg.mxu0
        %640 = vmatpush.msra.mxu0 0.0
        %641 = vmatpush.msra.mxu0 0.0
        %642 = vmatpush.msra.mxu0 0.0
        %643 = vmatpush.msra.mxu0 0.0
        %644 = vmatpush.msra.mxu0 0.0
        %645 = vmatpush.msra.mxu0 0.0
        %646 = vmatpush.msra.mxu0 0.0
        %647 = vmatpush.msra.mxu0 0.0
        %648 = vmatpush.msra.mxu0 0.0
        %649 = vmatpush.msra.mxu0 0.0
        %650 = vmatpush.msra.mxu0 0.0
        %651 = vmatpush.msra.mxu0 0.0
        %652 = vmatpush.msra.mxu0 0.0
        %653 = vmatpush.msra.mxu0 0.0
        %654 = vmatpush.msra.mxu0 %v603
        %655 = vmatpush.msra.mxu0 %v600
        %656 = vmatmul.f32.gmra.mxu0 %v453
        %v657 = vpop.f32.mrf.mxu0
        %v658 = vadd.f32 0.0, %v657
        %659 = vmatmul.f32.gmra.mxu0 %v456
        %v660 = vpop.f32.mrf.mxu0
        %v661 = vadd.f32 0.0, %v660
        %662 = vdwg.mxu0
        %663 = vmatpush.msra.mxu0 0.0
        %664 = vmatpush.msra.mxu0 0.0
        %665 = vmatpush.msra.mxu0 0.0
        %666 = vmatpush.msra.mxu0 0.0
        %667 = vmatpush.msra.mxu0 0.0
        %668 = vmatpush.msra.mxu0 0.0
        %669 = vmatpush.msra.mxu0 0.0
        %670 = vmatpush.msra.mxu0 0.0
        %671 = vmatpush.msra.mxu0 0.0
        %672 = vmatpush.msra.mxu0 0.0
        %673 = vmatpush.msra.mxu0 0.0
        %674 = vmatpush.msra.mxu0 0.0
        %675 = vmatpush.msra.mxu0 0.0
        %676 = vmatpush.msra.mxu0 0.0
        %677 = vmatpush.msra.mxu0 %v609
        %678 = vmatpush.msra.mxu0 %v606
        %679 = vmatmul.f32.gmra.mxu0 %v482
        %v680 = vpop.f32.mrf.mxu0
        %v681 = vadd.f32 0.0, %v680
        %682 = vmatmul.f32.gmra.mxu0 %v485
        %v683 = vpop.f32.mrf.mxu0
        %v684 = vadd.f32 0.0, %v683
        %685 = vdwg.mxu0
        %686 = vmatpush.msra.mxu0 0.0
        %687 = vmatpush.msra.mxu0 0.0
        %688 = vmatpush.msra.mxu0 0.0
        %689 = vmatpush.msra.mxu0 0.0
        %690 = vmatpush.msra.mxu0 0.0
        %691 = vmatpush.msra.mxu0 0.0
        %692 = vmatpush.msra.mxu0 0.0
        %693 = vmatpush.msra.mxu0 0.0
        %694 = vmatpush.msra.mxu0 0.0
        %695 = vmatpush.msra.mxu0 0.0
        %696 = vmatpush.msra.mxu0 0.0
        %697 = vmatpush.msra.mxu0 0.0
        %698 = vmatpush.msra.mxu0 0.0
        %699 = vmatpush.msra.mxu0 0.0
        %700 = vmatpush.msra.mxu0 %v615
        %701 = vmatpush.msra.mxu0 %v612
        %702 = vmatmul.f32.gmra.mxu0 %v511
        %v703 = vpop.f32.mrf.mxu0
        %v704 = vadd.f32 0.0, %v703
        %705 = vmatmul.f32.gmra.mxu0 %v514
        %v706 = vpop.f32.mrf.mxu0
        %v707 = vadd.f32 0.0, %v706
        %708 = vdwg.mxu0
        %s709 = scalar_lea.vmem %s4, 1
        %v710 = vld [vmem:[%s709] sm:$0x1]
        %v712 = vperm.slane %v710, 0
        %v714 = vadd.f32 %v635, %v712
        %v715 = vadd.f32 %v638, %v712
        %v716 = vadd.f32 %v658, %v712
        %v717 = vadd.f32 %v661, %v712
        %v718 = vadd.f32 %v681, %v712
        %v719 = vadd.f32 %v684, %v712
        %v720 = vadd.f32 %v704, %v712
        %v721 = vadd.f32 %v707, %v712
        %v722 = vmax.f32 %v714, 0.0
        %v723 = vmax.f32 %v715, 0.0
        %v724 = vmax.f32 %v716, 0.0
        %v725 = vmax.f32 %v717, 0.0
        %v726 = vmax.f32 %v718, 0.0
        %v727 = vmax.f32 %v719, 0.0
        %v728 = vmax.f32 %v720, 0.0
        %v729 = vmax.f32 %v721, 0.0
        %s730 = scalar_lea.vmem [#allocation8], 256
        %v731 = vld [vmem:[%s730] sm:$0xff]
        %v732 = vld [vmem:[%s730 + $0x8] sm:$0xff]
        %v733 = vld [vmem:[%s730 + $0x10] sm:$0xff]
        %v734 = vld [vmem:[%s730 + $0x18] sm:$0xff]
        %v735 = vld [vmem:[%s730 + $0x20] sm:$0xff]
        %v736 = vld [vmem:[%s730 + $0x28] sm:$0xff]
        %v737 = vld [vmem:[%s730 + $0x30] sm:$0xff]
        %v738 = vld [vmem:[%s730 + $0x38] sm:$0xff]
        %v739 = vld [vmem:[%s730 + $0x40] sm:$0xff]
        %v740 = vld [vmem:[%s730 + $0x48] sm:$0xff]
        %v741 = vld [vmem:[%s730 + $0x50] sm:$0xff]
        %v742 = vld [vmem:[%s730 + $0x58] sm:$0xff]
        %v743 = vld [vmem:[%s730 + $0x60] sm:$0xff]
        %v744 = vld [vmem:[%s730 + $0x68] sm:$0xff]
        %v745 = vld [vmem:[%s730 + $0x70] sm:$0xff]
        %v746 = vld [vmem:[%s730 + $0x78] sm:$0xff]
        %747 = vmatpush.msra.mxu0 %v746
        %748 = vmatpush.msra.mxu0 %v745
        %749 = vmatpush.msra.mxu0 %v744
        %750 = vmatpush.msra.mxu0 %v743
        %751 = vmatpush.msra.mxu0 %v742
        %752 = vmatpush.msra.mxu0 %v741
        %753 = vmatpush.msra.mxu0 %v740
        %754 = vmatpush.msra.mxu0 %v739
        %755 = vmatpush.msra.mxu0 %v738
        %756 = vmatpush.msra.mxu0 %v737
        %757 = vmatpush.msra.mxu0 %v736
        %758 = vmatpush.msra.mxu0 %v735
        %759 = vmatpush.msra.mxu0 %v734
        %760 = vmatpush.msra.mxu0 %v733
        %761 = vmatpush.msra.mxu0 %v732
        %762 = vmatpush.msra.mxu0 %v731
        %763 = vmatmul.f32.gmra.mxu0 %v722
        %v764 = vpop.f32.mrf.mxu0
        %v765 = vadd.f32 0.0, %v764
        %766 = vmatmul.f32.gmra.mxu0 %v723
        %v767 = vpop.f32.mrf.mxu0
        %v768 = vadd.f32 0.0, %v767
        %769 = vmatmul.f32.gmra.mxu0 %v724
        %v770 = vpop.f32.mrf.mxu0
        %v771 = vadd.f32 0.0, %v770
        %772 = vmatmul.f32.gmra.mxu0 %v725
        %v773 = vpop.f32.mrf.mxu0
        %v774 = vadd.f32 0.0, %v773
        %775 = vmatmul.f32.gmra.mxu0 %v726
        %v776 = vpop.f32.mrf.mxu0
        %v777 = vadd.f32 0.0, %v776
        %778 = vmatmul.f32.gmra.mxu0 %v727
        %v779 = vpop.f32.mrf.mxu0
        %v780 = vadd.f32 0.0, %v779
        %781 = vmatmul.f32.gmra.mxu0 %v728
        %v782 = vpop.f32.mrf.mxu0
        %v783 = vadd.f32 0.0, %v782
        %784 = vmatmul.f32.gmra.mxu0 %v729
        %v785 = vpop.f32.mrf.mxu0
        %v786 = vadd.f32 0.0, %v785
        %787 = vdwg.mxu0
        %v788 = vld [vmem:[%s302] sm:$0x3]
        %v789 = vld [vmem:[%s302 + $0x2] sm:$0x3]
        %v790 = vld [vmem:[%s302 + $0x4] sm:$0x3]
        %v791 = vld [vmem:[%s302 + $0x6] sm:$0x3]
        %s792 = scalar_lea.vmem %s4, 2
        %v793 = vld [vmem:[%s792] sm:$0x1]
        %v795 = vperm.slane %v793, 0
        %v798 = vsel %vm422, %v788, 0
        %800 = vmatpush.msra.mxu0 0.0
        %801 = vmatpush.msra.mxu0 0.0
        %802 = vmatpush.msra.mxu0 0.0
        %803 = vmatpush.msra.mxu0 0.0
        %804 = vmatpush.msra.mxu0 0.0
        %805 = vmatpush.msra.mxu0 0.0
        %806 = vmatpush.msra.mxu0 0.0
        %807 = vmatpush.msra.mxu0 0.0
        %808 = vmatpush.msra.mxu0 0.0
        %809 = vmatpush.msra.mxu0 0.0
        %810 = vmatpush.msra.mxu0 0.0
        %811 = vmatpush.msra.mxu0 0.0
        %812 = vmatpush.msra.mxu0 0.0
        %813 = vmatpush.msra.mxu0 0.0
        %814 = vmatpush.msra.mxu0 %v768
        %815 = vmatpush.msra.mxu0 %v765
        %816 = vmatmul.f32.gmra.mxu0 %v798
        %v817 = vpop.f32.mrf.mxu0
        %v818 = vadd.f32 %v795, %v817
        %819 = vdwg.mxu0
        %v821 = vsel %vm422, %v789, 0
        %823 = vmatpush.msra.mxu0 0.0
        %824 = vmatpush.msra.mxu0 0.0
        %825 = vmatpush.msra.mxu0 0.0
        %826 = vmatpush.msra.mxu0 0.0
        %827 = vmatpush.msra.mxu0 0.0
        %828 = vmatpush.msra.mxu0 0.0
        %829 = vmatpush.msra.mxu0 0.0
        %830 = vmatpush.msra.mxu0 0.0
        %831 = vmatpush.msra.mxu0 0.0
        %832 = vmatpush.msra.mxu0 0.0
        %833 = vmatpush.msra.mxu0 0.0
        %834 = vmatpush.msra.mxu0 0.0
        %835 = vmatpush.msra.mxu0 0.0
        %836 = vmatpush.msra.mxu0 0.0
        %837 = vmatpush.msra.mxu0 %v774
        %838 = vmatpush.msra.mxu0 %v771
        %839 = vmatmul.f32.gmra.mxu0 %v821
        %v840 = vpop.f32.mrf.mxu0
        %v841 = vadd.f32 %v795, %v840
        %842 = vdwg.mxu0
        %v844 = vsel %vm422, %v790, 0
        %846 = vmatpush.msra.mxu0 0.0
        %847 = vmatpush.msra.mxu0 0.0
        %848 = vmatpush.msra.mxu0 0.0
        %849 = vmatpush.msra.mxu0 0.0
        %850 = vmatpush.msra.mxu0 0.0
        %851 = vmatpush.msra.mxu0 0.0
        %852 = vmatpush.msra.mxu0 0.0
        %853 = vmatpush.msra.mxu0 0.0
        %854 = vmatpush.msra.mxu0 0.0
        %855 = vmatpush.msra.mxu0 0.0
        %856 = vmatpush.msra.mxu0 0.0
        %857 = vmatpush.msra.mxu0 0.0
        %858 = vmatpush.msra.mxu0 0.0
        %859 = vmatpush.msra.mxu0 0.0
        %860 = vmatpush.msra.mxu0 %v780
        %861 = vmatpush.msra.mxu0 %v777
        %862 = vmatmul.f32.gmra.mxu0 %v844
        %v863 = vpop.f32.mrf.mxu0
        %v864 = vadd.f32 %v795, %v863
        %865 = vdwg.mxu0
        %v867 = vsel %vm422, %v791, 0
        %869 = vmatpush.msra.mxu0 0.0
        %870 = vmatpush.msra.mxu0 0.0
        %871 = vmatpush.msra.mxu0 0.0
        %872 = vmatpush.msra.mxu0 0.0
        %873 = vmatpush.msra.mxu0 0.0
        %874 = vmatpush.msra.mxu0 0.0
        %875 = vmatpush.msra.mxu0 0.0
        %876 = vmatpush.msra.mxu0 0.0
        %877 = vmatpush.msra.mxu0 0.0
        %878 = vmatpush.msra.mxu0 0.0
        %879 = vmatpush.msra.mxu0 0.0
        %880 = vmatpush.msra.mxu0 0.0
        %881 = vmatpush.msra.mxu0 0.0
        %882 = vmatpush.msra.mxu0 0.0
        %883 = vmatpush.msra.mxu0 %v786
        %884 = vmatpush.msra.mxu0 %v783
        %885 = vmatmul.f32.gmra.mxu0 %v867
        %v886 = vpop.f32.mrf.mxu0
        %v887 = vadd.f32 %v795, %v886
        %888 = vdwg.mxu0
        %889 = vst [vmem:[%s344] sm:$0x3] %v818
        %890 = vst [vmem:[%s344 + $0x2] sm:$0x3] %v841
        %891 = vst [vmem:[%s344 + $0x4] sm:$0x3] %v864
        %892 = vst [vmem:[%s344 + $0x6] sm:$0x3] %v887
        %s893 = sand.u32 %s154, 1
        %s894 = scalar_lea.sflag [#allocation4], %s893
        %s895 = sand.u32 %s154, 1
        %s896 = smul.addr %s895, 8
        %s897 = scalar_lea.vmem [#allocation10], %s896
        // Predicated region
        $region57: #{tpu_custom_call.1} parent=39 // pred_check
          %p898 = pneg %p164
        $region58: #{tpu_custom_call.1} parent=39 // pred_check_branch
          %900 = sbr.rel (%p898) target = $region60
        $region59: #{tpu_custom_call.1} parent=39 // pred_region
          %s901 = smul.u32 4, %s26
          %903 = vsyncadd %s894, 0
          %s904 = smul.addr %s901, 2
          %s905 = scalar_lea.hbm %s5, %s904
          %s906 = sshll.u32 %s897, 4
          %s907 = int_to_ptr.vmem [resolvable:$true] %s906
          %s908 = sshll.u32 %s905, 4
          %s909 = int_to_ptr.hbm [resolvable:$true] %s908
          %914 = dma.vmem_to_hbm [thread:$0]  %s907, 128, %s909, %s894, 32, 32, 2
        $region60: #{tpu_custom_call.1} parent=39 // pred_fallthru
          _
      $region40: #{tpu_custom_call.1} parent=5 // pred_fallthru
        _
      %p915 = scmp.le.s32.totalorder 2, %s21
      // Predicated region
      $region61: #{tpu_custom_call.1} parent=5 // pred_check
        %p916 = pneg %p915
      $region62: #{tpu_custom_call.1} parent=5 // pred_check_branch
        %918 = sbr.rel (%p916) target = $region64
      $region63: #{tpu_custom_call.1} parent=5 // pred_region
        %s919 = ssub.s32 %s21, 2
        // Predicated region
        $region65: #{tpu_custom_call.1} parent=63 // pred_check
          %p920 = pneg %p170
        $region66: #{tpu_custom_call.1} parent=63 // pred_check_branch
          %922 = sbr.rel (%p920) target = $region68
        $region67: #{tpu_custom_call.1} parent=63 // pred_region
          %s923 = sand.u32 %s155, 1
          %s924 = scalar_lea.sflag [#allocation4], %s923
          %s925 = sand.u32 %s155, 1
          %s926 = smul.addr %s925, 8
          %s927 = scalar_lea.vmem [#allocation10], %s926
          %929 = dma.done %s924, 128
        $region68: #{tpu_custom_call.1} parent=63 // pred_fallthru
          _
      $region64: #{tpu_custom_call.1} parent=5 // pred_fallthru
        _
    $region6: #{tpu_custom_call.1} parent=1 // loop_footer
      %s25 = sadd.s32 1, %s21
    $region7: #{tpu_custom_call.1} parent=1 // loop_footer_branch
      %20 = sbr.rel target = $region3
    $region8: #{tpu_custom_call.1} parent=1 // loop_exit
      _
    %930 = vsyncpa [#allocation3], 1
    %s931 = scalar_lea.sflag [#allocation3], 1
    %932 = vsyncpa %s931, 1
    %933 = vsyncpa [#allocation6], 1
    %s934 = scalar_lea.sflag [#allocation6], 1
    %935 = vsyncpa %s934, 1
    %936 = vsyncpa [#allocation9], 1
    %937 = vsyncpa [#allocation4], 1
    %s938 = scalar_lea.sflag [#allocation4], 1
    %939 = vsyncpa %s938, 1

</llo_original>
